<compile_context>
chip_gen: v7x
topology: tpu7x:2x2x1
jax: 0.10.0
libtpu: 0.0.40
codegen_flags: <defaults>
</compile_context>

<pallas_src>
import functools

import jax
import jax.numpy as jnp
from jax.experimental import pallas as pl
from jax.experimental.pallas import tpu as pltpu

LANES = 128            # vreg lane width (last dim)
MAX_TILE_ROWS = 2048   # 2048*128*4 B = 1 MiB per stream per pipeline buffer
NUM_CORE_SPLITS = 2    # per-TensorCore partial sums (v7x megacore); harmless on 1-TC chips
SMALL_N = 2048         # below this, plain jnp beats padding + kernel launch


def _round_up(x, m):
    return ((x + m - 1) // m) * m


def _to_slab(x, rows):
    """(n,) -> (rows, 128): free reshape when n % 128 == 0, else minimal tail pad."""
    n = int(x.shape[0])
    if n != rows * LANES:
        x = jnp.pad(x, (0, rows * LANES - n))
    return x.reshape(rows, LANES)


def _loss_ref(gs_fit, gsw, params, penalties=None):
    """Pure-jnp reference / small-N fallback (same semantics as the kernel)."""
    relu = lambda v: jnp.maximum(v, 0.0)
    loss = jnp.mean((gs_fit - gsw) ** 2) * 10.0 + jnp.sum(relu(-params))
    if penalties is not None:
        dq, dd, d2q = penalties
        loss = loss + jnp.sum(relu(-dq)) + jnp.sum(relu(dd)) + jnp.sum(relu(d2q))
    return loss


def _loss_sc_kernel(mse_scale, rows, tile_rows, inner_steps, with_pen, *refs):
    if with_pen:
        (gsfit_ref, gsw_ref, dq_ref, dd_ref, d2q_ref, params_ref,
         out_ref, mse_acc, pos_acc, neg_acc) = refs
    else:
        gsfit_ref, gsw_ref, params_ref, out_ref, mse_acc = refs
        dq_ref = dd_ref = d2q_ref = pos_acc = neg_acc = None

    j = pl.program_id(0)   # per-TensorCore partial-sum axis ("parallel")
    i = pl.program_id(1)   # streamed reduction axis ("arbitrary"): carries accumulators

    @pl.when(i == 0)
    def _init():
        mse_acc[...] = jnp.zeros_like(mse_acc)
        if with_pen:
            pos_acc[...] = jnp.zeros_like(pos_acc)
            neg_acc[...] = jnp.zeros_like(neg_acc)

    # Row-validity mask: zeroes the ragged boundary tile and the clamped
    # duplicate tile on the idle tail of the outer axis.  Pure VPU work,
    # far below the HBM roofline on every generation.
    base = (j * inner_steps + i) * tile_rows
    r = jax.lax.broadcasted_iota(jnp.int32, (tile_rows, LANES), 0)
    valid = (base + r) < rows

    def fold(x):
        # (tile_rows,128) -> (8,128) via sublane-group adds only (VPU, no XLU).
        return jnp.sum(x.reshape(tile_rows // 8, 8, LANES), axis=0)

    diff = jnp.where(valid, gsfit_ref[...] - gsw_ref[...], 0.0)
    mse_acc[...] += fold(diff * diff)
    if with_pen:
        pos = jnp.maximum(dd_ref[...], 0.0) + jnp.maximum(d2q_ref[...], 0.0)
        pos_acc[...] += fold(jnp.where(valid, pos, 0.0))
        # relu(-x) == -min(x, 0): accumulate min, negate once at finalize.
        neg_acc[...] += fold(jnp.where(valid, jnp.minimum(dq_ref[...], 0.0), 0.0))

    @pl.when(i == inner_steps - 1)
    def _finalize():
        val = jnp.sum(mse_acc[...]) * mse_scale
        # Parameter non-negativity penalty (resident block); charge core 0 only
        # so the cross-core combine outside doesn't double-count it.
        val += jnp.where(j == 0, -jnp.sum(jnp.minimum(params_ref[...], 0.0)), 0.0)
        if with_pen:
            val += jnp.sum(pos_acc[...]) - jnp.sum(neg_acc[...])
        out_ref[...] = jnp.full((8, LANES), val, jnp.float32)


def loss_sc(gs_fit, gsw, params, penalties=None):
    """Compute the lossSC scalar loss with a fused Pallas TPU kernel.

    gs_fit, gsw : f32[N]   model-fitted / observed stomatal conductance
    params      : f32[P]   flattened model parameters (scm.parameters())
    penalties   : optional (dgs_dQ, dgs_dD, d2gs_dQ2) each f32[N]  (BMF only)
    returns f32 scalar loss
    """
    gs_fit = jnp.asarray(gs_fit, jnp.float32).reshape(-1)
    gsw = jnp.asarray(gsw, jnp.float32).reshape(-1)
    params = jnp.asarray(params, jnp.float32).reshape(-1)
    if penalties is not None:
        penalties = tuple(jnp.asarray(p, jnp.float32).reshape(-1) for p in penalties)

    n = int(gs_fit.shape[0])
    if int(gsw.shape[0]) != n:
        raise ValueError("gs_fit and gsw must have the same length")

    with_pen = penalties is not None
    streams = [gs_fit, gsw] + (list(penalties) if with_pen else [])

    # Small-N fallback (launch/padding dominate) and mismatched penalty lengths.
    if n < SMALL_N or any(int(s.shape[0]) != n for s in streams):
        return _loss_ref(gs_fit, gsw, params, penalties)

    rows = int(pl.cdiv(n, LANES))
    tile_rows = min(MAX_TILE_ROWS, _round_up(rows, 8))
    nblocks = int(pl.cdiv(rows, tile_rows))
    inner = int(pl.cdiv(nblocks, NUM_CORE_SPLITS))

    slabs = [_to_slab(s, rows) for s in streams]

    p = int(params.shape[0])
    p_rows = _round_up(max(int(pl.cdiv(p, LANES)), 1), 8)
    params2 = jnp.zeros((p_rows * LANES,), jnp.float32).at[:p].set(params)
    params2 = params2.reshape(p_rows, LANES)

    def data_map(j, i):
        # Clamp so the idle tail of the outer axis never issues a fully
        # out-of-bounds DMA; the duplicate tile is zeroed by the row mask.
        return (jnp.minimum(j * inner + i, nblocks - 1), 0)

    in_specs = ([pl.BlockSpec((tile_rows, LANES), data_map)] * len(slabs)
                + [pl.BlockSpec((p_rows, LANES), lambda j, i: (0, 0))])  # params resident

    scratch = [pltpu.VMEM((8, LANES), jnp.float32)
               for _ in range(3 if with_pen else 1)]

    kernel = functools.partial(_loss_sc_kernel, float(10.0 / n), rows, tile_rows,
                               inner, with_pen)

    out = pl.pallas_call(
        kernel,
        out_shape=jax.ShapeDtypeStruct((NUM_CORE_SPLITS * 8, LANES), jnp.float32),
        grid=(NUM_CORE_SPLITS, inner),
        in_specs=in_specs,
        out_specs=pl.BlockSpec((8, LANES), lambda j, i: (j, 0)),
        scratch_shapes=scratch,
        compiler_params=pltpu.CompilerParams(
            # Inner axis carries the accumulators -> must stay "arbitrary".
            dimension_semantics=("parallel", "arbitrary")),
    )(*slabs, params2)

    # Tiny cross-core combine of the per-TensorCore partial losses.
    return jnp.sum(out[0::8, 0])


if __name__ == "__main__":
    key = jax.random.PRNGKey(0)
    k1, k2, k3, k4, k5, k6 = jax.random.split(key, 6)

    P = 5  # stomatal-model parameters
    params = 0.1 * jax.random.normal(k3, (P,), jnp.float32)  # some negative

    def make_data(n):
        gsw = jax.random.uniform(k1, (n,), jnp.float32, 0.05, 0.5)       # observed
        gs_fit = gsw + 0.05 * jax.random.normal(k2, (n,), jnp.float32)   # model fit
        dq = 0.01 * jax.random.normal(k4, (n,), jnp.float32)
        dd = 0.01 * jax.random.normal(k5, (n,), jnp.float32)
        d2q = 0.001 * jax.random.normal(k6, (n,), jnp.float32)
        return gs_fit, gsw, (dq, dd, d2q)

    # BMF branch, kernel path (N not 128-aligned -> exercises the tail mask).
    N = 20000
    gs_fit, gsw, pen = make_data(N)
    loss_bmf = jax.block_until_ready(loss_sc(gs_fit, gsw, params, pen))
    ref_bmf = _loss_ref(gs_fit, gsw, params, pen)
    assert jnp.allclose(loss_bmf, ref_bmf, rtol=1e-4, atol=1e-5), (loss_bmf, ref_bmf)

    # Non-BMF branch, kernel path (specialized 2-stream kernel, no zero slabs).
    loss_plain = jax.block_until_ready(loss_sc(gs_fit, gsw, params))
    ref_plain = _loss_ref(gs_fit, gsw, params, None)
    assert jnp.allclose(loss_plain, ref_plain, rtol=1e-4, atol=1e-5), (loss_plain, ref_plain)

    # Small-N fallback (pure jnp path, same semantics).
    gs_fit_s, gsw_s, pen_s = make_data(100)
    loss_small = jax.block_until_ready(loss_sc(gs_fit_s, gsw_s, params, pen_s))
    ref_small = _loss_ref(gs_fit_s, gsw_s, params, pen_s)
    assert jnp.allclose(loss_small, ref_small, rtol=1e-5, atol=1e-6), (loss_small, ref_small)

    print("KERNEL_OK")
</pallas_src>

<mosaic_0001>
module attributes {stable_mosaic.version = 11 : i64} {
  func.func @_loss_sc_kernel(%arg0: i32, %arg1: i32, %arg2: memref<160x128xf32, #tpu.memory_space<vmem>>, %arg3: memref<160x128xf32, #tpu.memory_space<vmem>>, %arg4: memref<160x128xf32, #tpu.memory_space<vmem>>, %arg5: memref<160x128xf32, #tpu.memory_space<vmem>>, %arg6: memref<160x128xf32, #tpu.memory_space<vmem>>, %arg7: memref<8x128xf32, #tpu.memory_space<vmem>>, %arg8: memref<8x128xf32, #tpu.memory_space<vmem>>, %arg9: memref<8x128xf32, #tpu.memory_space<vmem>>, %arg10: memref<8x128xf32, #tpu.memory_space<vmem>>, %arg11: memref<8x128xf32, #tpu.memory_space<vmem>>) attributes {dimension_semantics = [#tpu.dimension_semantics<parallel>, #tpu.dimension_semantics<arbitrary>], iteration_bounds = array<i64: 2, 1>, scalar_prefetch = 0 : i64, scratch_operands = 3 : i64, tpu.core_type = #tpu.core_type<tc>, window_params = [{transform_indices = @transform_0, window_bounds = array<i64: 160, 128>}, {transform_indices = @transform_1, window_bounds = array<i64: 160, 128>}, {transform_indices = @transform_2, window_bounds = array<i64: 160, 128>}, {transform_indices = @transform_3, window_bounds = array<i64: 160, 128>}, {transform_indices = @transform_4, window_bounds = array<i64: 160, 128>}, {pipeline_mode = #tpu.pipeline_mode<synchronous>, transform_indices = @transform_5, window_bounds = array<i64: 8, 128>}, {transform_indices = @transform_6, window_bounds = array<i64: 8, 128>}]} {
    %c0_i32 = arith.constant 0 : i32
    %0 = arith.cmpi eq, %arg1, %c0_i32 : i32
    %1 = arith.extui %0 : i1 to i32
    %c0_i32_0 = arith.constant 0 : i32
    %2 = arith.cmpi ne, %1, %c0_i32_0 : i32
    scf.if %2 {
      %cst_32 = arith.constant 0.000000e+00 : f32
      %49 = vector.broadcast %cst_32 : f32 to vector<8x128xf32>
      %c0_33 = arith.constant 0 : index
      %c0_34 = arith.constant 0 : index
      %50 = vector.load %arg9[%c0_33, %c0_34] : memref<8x128xf32, #tpu.memory_space<vmem>>, vector<8x128xf32>
      tpu.vector_store %arg9[%c0_33, %c0_34], %49 {strides = array<i32>} : memref<8x128xf32, #tpu.memory_space<vmem>>, vector<8x128xf32>,
      %cst_35 = arith.constant 0.000000e+00 : f32
      %51 = vector.broadcast %cst_35 : f32 to vector<8x128xf32>
      %c0_36 = arith.constant 0 : index
      %c0_37 = arith.constant 0 : index
      %52 = vector.load %arg10[%c0_36, %c0_37] : memref<8x128xf32, #tpu.memory_space<vmem>>, vector<8x128xf32>
      tpu.vector_store %arg10[%c0_36, %c0_37], %51 {strides = array<i32>} : memref<8x128xf32, #tpu.memory_space<vmem>>, vector<8x128xf32>,
      %cst_38 = arith.constant 0.000000e+00 : f32
      %53 = vector.broadcast %cst_38 : f32 to vector<8x128xf32>
      %c0_39 = arith.constant 0 : index
      %c0_40 = arith.constant 0 : index
      %54 = vector.load %arg11[%c0_39, %c0_40] : memref<8x128xf32, #tpu.memory_space<vmem>>, vector<8x128xf32>
      tpu.vector_store %arg11[%c0_39, %c0_40], %53 {strides = array<i32>} : memref<8x128xf32, #tpu.memory_space<vmem>>, vector<8x128xf32>,
    } else {
    }
    %c1_i32 = arith.constant 1 : i32
    %3 = arith.muli %arg0, %c1_i32 : i32
    %4 = arith.addi %3, %arg1 : i32
    %c160_i32 = arith.constant 160 : i32
    %5 = arith.muli %4, %c160_i32 : i32
    %6 = tpu.iota {dimensions = array<i32: 0>} : vector<160x128xi32>
    %7 = vector.broadcast %5 : i32 to vector<160x128xi32>
    %8 = arith.addi %7, %6 : vector<160x128xi32>
    %c157_i32 = arith.constant 157 : i32
    %9 = vector.broadcast %c157_i32 : i32 to vector<160x128xi32>
    %10 = arith.cmpi slt, %8, %9 : vector<160x128xi32>
    %c0 = arith.constant 0 : index
    %c0_1 = arith.constant 0 : index
    %11 = vector.load %arg2[%c0, %c0_1] : memref<160x128xf32, #tpu.memory_space<vmem>>, vector<160x128xf32>
    %c0_2 = arith.constant 0 : index
    %c0_3 = arith.constant 0 : index
    %12 = vector.load %arg3[%c0_2, %c0_3] : memref<160x128xf32, #tpu.memory_space<vmem>>, vector<160x128xf32>
    %13 = arith.subf %11, %12 : vector<160x128xf32>
    %cst = arith.constant 0.000000e+00 : f32
    %14 = vector.broadcast %cst : f32 to vector<160x128xf32>
    %15 = arith.select %10, %13, %14 : vector<160x128xi1>, vector<160x128xf32>
    %c0_4 = arith.constant 0 : index
    %c0_5 = arith.constant 0 : index
    %16 = vector.load %arg9[%c0_4, %c0_5] : memref<8x128xf32, #tpu.memory_space<vmem>>, vector<8x128xf32>
    %17 = arith.mulf %15, %15 : vector<160x128xf32>
    %18 = vector.shape_cast %17 : vector<160x128xf32> to vector<20x8x128xf32>
    %cst_6 = arith.constant dense<0.000000e+00> : vector<8x128xf32>
    %19 = vector.multi_reduction <add>, %18, %cst_6 [0] : vector<20x8x128xf32> to vector<8x128xf32>
    %20 = arith.addf %16, %19 : vector<8x128xf32>
    %c0_7 = arith.constant 0 : index
    %c0_8 = arith.constant 0 : index
    %21 = vector.load %arg9[%c0_7, %c0_8] : memref<8x128xf32, #tpu.memory_space<vmem>>, vector<8x128xf32>
    tpu.vector_store %arg9[%c0_7, %c0_8], %20 {strides = array<i32>} : memref<8x128xf32, #tpu.memory_space<vmem>>, vector<8x128xf32>,
    %c0_9 = arith.constant 0 : index
    %c0_10 = arith.constant 0 : index
    %22 = vector.load %arg5[%c0_9, %c0_10] : memref<160x128xf32, #tpu.memory_space<vmem>>, vector<160x128xf32>
    %cst_11 = arith.constant 0.000000e+00 : f32
    %23 = vector.broadcast %cst_11 : f32 to vector<160x128xf32>
    %24 = arith.maximumf %22, %23 : vector<160x128xf32>
    %c0_12 = arith.constant 0 : index
    %c0_13 = arith.constant 0 : index
    %25 = vector.load %arg6[%c0_12, %c0_13] : memref<160x128xf32, #tpu.memory_space<vmem>>, vector<160x128xf32>
    %cst_14 = arith.constant 0.000000e+00 : f32
    %26 = vector.broadcast %cst_14 : f32 to vector<160x128xf32>
    %27 = arith.maximumf %25, %26 : vector<160x128xf32>
    %28 = arith.addf %24, %27 : vector<160x128xf32>
    %c0_15 = arith.constant 0 : index
    %c0_16 = arith.constant 0 : index
    %29 = vector.load %arg10[%c0_15, %c0_16] : memref<8x128xf32, #tpu.memory_space<vmem>>, vector<8x128xf32>
    %cst_17 = arith.constant 0.000000e+00 : f32
    %30 = vector.broadcast %cst_17 : f32 to vector<160x128xf32>
    %31 = arith.select %10, %28, %30 : vector<160x128xi1>, vector<160x128xf32>
    %32 = vector.shape_cast %31 : vector<160x128xf32> to vector<20x8x128xf32>
    %cst_18 = arith.constant dense<0.000000e+00> : vector<8x128xf32>
    %33 = vector.multi_reduction <add>, %32, %cst_18 [0] : vector<20x8x128xf32> to vector<8x128xf32>
    %34 = arith.addf %29, %33 : vector<8x128xf32>
    %c0_19 = arith.constant 0 : index
    %c0_20 = arith.constant 0 : index
    %35 = vector.load %arg10[%c0_19, %c0_20] : memref<8x128xf32, #tpu.memory_space<vmem>>, vector<8x128xf32>
    tpu.vector_store %arg10[%c0_19, %c0_20], %34 {strides = array<i32>} : memref<8x128xf32, #tpu.memory_space<vmem>>, vector<8x128xf32>,
    %c0_21 = arith.constant 0 : index
    %c0_22 = arith.constant 0 : index
    %36 = vector.load %arg11[%c0_21, %c0_22] : memref<8x128xf32, #tpu.memory_space<vmem>>, vector<8x128xf32>
    %c0_23 = arith.constant 0 : index
    %c0_24 = arith.constant 0 : index
    %37 = vector.load %arg4[%c0_23, %c0_24] : memref<160x128xf32, #tpu.memory_space<vmem>>, vector<160x128xf32>
    %cst_25 = arith.constant 0.000000e+00 : f32
    %38 = vector.broadcast %cst_25 : f32 to vector<160x128xf32>
    %39 = arith.minimumf %37, %38 : vector<160x128xf32>
    %cst_26 = arith.constant 0.000000e+00 : f32
    %40 = vector.broadcast %cst_26 : f32 to vector<160x128xf32>
    %41 = arith.select %10, %39, %40 : vector<160x128xi1>, vector<160x128xf32>
    %42 = vector.shape_cast %41 : vector<160x128xf32> to vector<20x8x128xf32>
    %cst_27 = arith.constant dense<0.000000e+00> : vector<8x128xf32>
    %43 = vector.multi_reduction <add>, %42, %cst_27 [0] : vector<20x8x128xf32> to vector<8x128xf32>
    %44 = arith.addf %36, %43 : vector<8x128xf32>
    %c0_28 = arith.constant 0 : index
    %c0_29 = arith.constant 0 : index
    %45 = vector.load %arg11[%c0_28, %c0_29] : memref<8x128xf32, #tpu.memory_space<vmem>>, vector<8x128xf32>
    tpu.vector_store %arg11[%c0_28, %c0_29], %44 {strides = array<i32>} : memref<8x128xf32, #tpu.memory_space<vmem>>, vector<8x128xf32>,
    %c0_i32_30 = arith.constant 0 : i32
    %46 = arith.cmpi eq, %arg1, %c0_i32_30 : i32
    %47 = arith.extui %46 : i1 to i32
    %c0_i32_31 = arith.constant 0 : i32
    %48 = arith.cmpi ne, %47, %c0_i32_31 : i32
    scf.if %48 {
      %c0_32 = arith.constant 0 : index
      %c0_33 = arith.constant 0 : index
      %49 = vector.load %arg9[%c0_32, %c0_33] : memref<8x128xf32, #tpu.memory_space<vmem>>, vector<8x128xf32>
      %50 = vector.shape_cast %49 : vector<8x128xf32> to vector<1x8x128xf32>
      %cst_34 = arith.constant dense<0.000000e+00> : vector<1xf32>
      %51 = vector.multi_reduction <add>, %50, %cst_34 [1, 2] : vector<1x8x128xf32> to vector<1xf32>
      %52 = vector.shape_cast %51 : vector<1xf32> to vector<1x1x1xf32>
      %53 = vector.extract %52[0, 0, 0] : f32 from vector<1x1x1xf32>
      %cst_35 = arith.constant 5.000000e-04 : f32
      %54 = arith.mulf %53, %cst_35 : f32
      %c0_i32_36 = arith.constant 0 : i32
      %55 = arith.cmpi eq, %arg0, %c0_i32_36 : i32
      %c0_37 = arith.constant 0 : index
      %c0_38 = arith.constant 0 : index
      %56 = vector.load %arg7[%c0_37, %c0_38] : memref<8x128xf32, #tpu.memory_space<vmem>>, vector<8x128xf32>
      %cst_39 = arith.constant 0.000000e+00 : f32
      %57 = vector.broadcast %cst_39 : f32 to vector<8x128xf32>
      %58 = arith.minimumf %56, %57 : vector<8x128xf32>
      %59 = vector.shape_cast %58 : vector<8x128xf32> to vector<1x8x128xf32>
      %cst_40 = arith.constant dense<0.000000e+00> : vector<1xf32>
      %60 = vector.multi_reduction <add>, %59, %cst_40 [1, 2] : vector<1x8x128xf32> to vector<1xf32>
      %61 = vector.shape_cast %60 : vector<1xf32> to vector<1x1x1xf32>
      %62 = vector.extract %61[0, 0, 0] : f32 from vector<1x1x1xf32>
      %cst_41 = arith.constant 0.000000e+00 : f32
      %63 = arith.subf %cst_41, %62 : f32
      %cst_42 = arith.constant 0.000000e+00 : f32
      %64 = arith.select %55, %63, %cst_42 : f32
      %65 = arith.addf %54, %64 : f32
      %c0_43 = arith.constant 0 : index
      %c0_44 = arith.constant 0 : index
      %66 = vector.load %arg10[%c0_43, %c0_44] : memref<8x128xf32, #tpu.memory_space<vmem>>, vector<8x128xf32>
      %67 = vector.shape_cast %66 : vector<8x128xf32> to vector<1x8x128xf32>
      %cst_45 = arith.constant dense<0.000000e+00> : vector<1xf32>
      %68 = vector.multi_reduction <add>, %67, %cst_45 [1, 2] : vector<1x8x128xf32> to vector<1xf32>
      %69 = vector.shape_cast %68 : vector<1xf32> to vector<1x1x1xf32>
      %70 = vector.extract %69[0, 0, 0] : f32 from vector<1x1x1xf32>
      %c0_46 = arith.constant 0 : index
      %c0_47 = arith.constant 0 : index
      %71 = vector.load %arg11[%c0_46, %c0_47] : memref<8x128xf32, #tpu.memory_space<vmem>>, vector<8x128xf32>
      %72 = vector.shape_cast %71 : vector<8x128xf32> to vector<1x8x128xf32>
      %cst_48 = arith.constant dense<0.000000e+00> : vector<1xf32>
      %73 = vector.multi_reduction <add>, %72, %cst_48 [1, 2] : vector<1x8x128xf32> to vector<1xf32>
      %74 = vector.shape_cast %73 : vector<1xf32> to vector<1x1x1xf32>
      %75 = vector.extract %74[0, 0, 0] : f32 from vector<1x1x1xf32>
      %76 = arith.subf %70, %75 : f32
      %77 = arith.addf %65, %76 : f32
      %78 = vector.broadcast %77 : f32 to vector<8x128xf32>
      %c0_49 = arith.constant 0 : index
      %c0_50 = arith.constant 0 : index
      %79 = vector.load %arg8[%c0_49, %c0_50] : memref<8x128xf32, #tpu.memory_space<vmem>>, vector<8x128xf32>
      tpu.vector_store %arg8[%c0_49, %c0_50], %78 {strides = array<i32>} : memref<8x128xf32, #tpu.memory_space<vmem>>, vector<8x128xf32>,
    } else {
    }
    return
  }
  func.func @transform_0(%arg0: i32, %arg1: i32) -> (i32, i32) {
    %c1_i32 = arith.constant 1 : i32
    %0 = arith.muli %arg0, %c1_i32 : i32
    %1 = arith.addi %0, %arg1 : i32
    %c0_i32 = arith.constant 0 : i32
    %2 = arith.minsi %1, %c0_i32 : i32
    %c0_i32_0 = arith.constant 0 : i32
    %c0_i32_1 = arith.constant 0 : i32
    return %2, %c0_i32_0 : i32, i32
  }
  func.func @transform_1(%arg0: i32, %arg1: i32) -> (i32, i32) {
    %c1_i32 = arith.constant 1 : i32
    %0 = arith.muli %arg0, %c1_i32 : i32
    %1 = arith.addi %0, %arg1 : i32
    %c0_i32 = arith.constant 0 : i32
    %2 = arith.minsi %1, %c0_i32 : i32
    %c0_i32_0 = arith.constant 0 : i32
    %c0_i32_1 = arith.constant 0 : i32
    return %2, %c0_i32_0 : i32, i32
  }
  func.func @transform_2(%arg0: i32, %arg1: i32) -> (i32, i32) {
    %c1_i32 = arith.constant 1 : i32
    %0 = arith.muli %arg0, %c1_i32 : i32
    %1 = arith.addi %0, %arg1 : i32
    %c0_i32 = arith.constant 0 : i32
    %2 = arith.minsi %1, %c0_i32 : i32
    %c0_i32_0 = arith.constant 0 : i32
    %c0_i32_1 = arith.constant 0 : i32
    return %2, %c0_i32_0 : i32, i32
  }
  func.func @transform_3(%arg0: i32, %arg1: i32) -> (i32, i32) {
    %c1_i32 = arith.constant 1 : i32
    %0 = arith.muli %arg0, %c1_i32 : i32
    %1 = arith.addi %0, %arg1 : i32
    %c0_i32 = arith.constant 0 : i32
    %2 = arith.minsi %1, %c0_i32 : i32
    %c0_i32_0 = arith.constant 0 : i32
    %c0_i32_1 = arith.constant 0 : i32
    return %2, %c0_i32_0 : i32, i32
  }
  func.func @transform_4(%arg0: i32, %arg1: i32) -> (i32, i32) {
    %c1_i32 = arith.constant 1 : i32
    %0 = arith.muli %arg0, %c1_i32 : i32
    %1 = arith.addi %0, %arg1 : i32
    %c0_i32 = arith.constant 0 : i32
    %2 = arith.minsi %1, %c0_i32 : i32
    %c0_i32_0 = arith.constant 0 : i32
    %c0_i32_1 = arith.constant 0 : i32
    return %2, %c0_i32_0 : i32, i32
  }
  func.func @transform_5(%arg0: i32, %arg1: i32) -> (i32, i32) {
    %c0_i32 = arith.constant 0 : i32
    %c0_i32_0 = arith.constant 0 : i32
    %c0_i32_1 = arith.constant 0 : i32
    return %c0_i32, %c0_i32_0 : i32, i32
  }
  func.func @transform_6(%arg0: i32, %arg1: i32) -> (i32, i32) {
    %c0_i32 = arith.constant 0 : i32
    %c0_i32_0 = arith.constant 0 : i32
    return %arg0, %c0_i32 : i32, i32
  }
}

</mosaic_0001>

<llo_original>
// kernel: tpu_custom_call.1
$region0: #{tpu_custom_call.1}
  #allocation0 [shape = 'u32[]', space=smem, size = 0x4, offset = 0x4, fixed_abs, tag = 'smem constant byte address 0x4 - core index']
  #allocation1 [shape = 'u32[144,128]{1,0:T(1,128)}', space=vmem, size = 0x12000, scoped, tag = 'internal scratch']
  #allocation2 [shape = 'f32[8,128]{1,0:T(8,128)}', space=vmem, size = 0x1000, scoped, tag = 'scratch operand']
  #allocation3 [shape = 'f32[8,128]{1,0:T(8,128)}', space=vmem, size = 0x1000, scoped, tag = 'scratch operand']
  #allocation4 [shape = 'f32[8,128]{1,0:T(8,128)}', space=vmem, size = 0x1000, scoped, tag = 'scratch operand']
  %s0 = inlined_call_operand.hbm [shape: f32[157,128], index: 0, kind: input, shape index: {}]
  %s1 = inlined_call_operand.hbm [shape: f32[157,128], index: 1, kind: input, shape index: {}]
  %s2 = inlined_call_operand.hbm [shape: f32[157,128], index: 2, kind: input, shape index: {}]
  %s3 = inlined_call_operand.hbm [shape: f32[157,128], index: 3, kind: input, shape index: {}]
  %s4 = inlined_call_operand.hbm [shape: f32[157,128], index: 4, kind: input, shape index: {}]
  %s5 = inlined_call_operand.vmem [shape: f32[8,128], index: 5, kind: input, shape index: {}]
  %s6 = inlined_call_operand.hbm [shape: f32[16,128], index: 6, kind: output, shape index: {}]
  %s7 = sld [smem:[#allocation0]]
  $region85: #{tpu_custom_call.1} parent=0
    _
  %s9 = ssub.s32 1, %s7
  %s10 = scalar_select 0, %s9, %s7
  $region1: #{tpu_custom_call.1} parent=0
    #allocation5 [shape = 'u8[163840]{0}', space=vmem, size = 0x28000, scoped, tag = 'input window, operand 0']
    #allocation6 [shape = 's32[2]{0}', space=sflag, size = 0x8, scoped, tag = 'scoped memory for tpu_custom_call.1']
    #allocation7 [shape = 's32[2]{0}', space=sflag, size = 0x8, scoped, tag = 'scoped memory for tpu_custom_call.1']
    #allocation8 [shape = 'u8[163840]{0}', space=vmem, size = 0x28000, scoped, tag = 'input window, operand 1']
    #allocation9 [shape = 's32[2]{0}', space=sflag, size = 0x8, scoped, tag = 'scoped memory for tpu_custom_call.1']
    #allocation10 [shape = 'u8[163840]{0}', space=vmem, size = 0x28000, scoped, tag = 'input window, operand 2']
    #allocation11 [shape = 'u8[163840]{0}', space=vmem, size = 0x28000, scoped, tag = 'input window, operand 3']
    #allocation12 [shape = 's32[2]{0}', space=sflag, size = 0x8, scoped, tag = 'scoped memory for tpu_custom_call.1']
    #allocation13 [shape = 'u8[163840]{0}', space=vmem, size = 0x28000, scoped, tag = 'input window, operand 4']
    #allocation14 [shape = 'u8[8192]{0}', space=vmem, size = 0x2000, scoped, tag = 'output window, operand 0']
    %11 = vsyncpa [#allocation6], 0
    %s12 = scalar_lea.sflag [#allocation6], 1
    %13 = vsyncpa %s12, 0
    %14 = vsyncpa [#allocation9], 0
    %s15 = scalar_lea.sflag [#allocation9], 1
    %16 = vsyncpa %s15, 0
    %17 = vsyncpa [#allocation12], 0
    %s18 = scalar_lea.sflag [#allocation12], 1
    %19 = vsyncpa %s18, 0
    %20 = vsyncpa [#allocation7], 0
    %s21 = scalar_lea.sflag [#allocation7], 1
    %22 = vsyncpa %s21, 0
    loop: start=0, step=1, limit=4
    $region2: #{tpu_custom_call.1} parent=1 // loop_pre_header
      _
    $region3: #{tpu_custom_call.1} parent=1 // loop_header
      %s24 = sphi 0, %s28
      %p25 = scmp.ge.s32.totalorder %s24, 4
      %s31 = sphi 0, %s43
      %s32 = sphi 0, %s39
      %s33 = sphi 0, %s31
      %s34 = sphi 0, %s32
      %s35 = sphi 0, %s33
      %s36 = sphi 0, %s34
      %s52 = sphi 0, %s54
      %s55 = sphi 0, %s52
      %s56 = sphi 0, %s55
      %s72 = sphi 0, %s56
      %s84 = sphi 0, %s86
      %s87 = sphi 0, %s84
      %s88 = sphi 0, %s87
      %s104 = sphi 0, %s88
      %s116 = sphi 0, %s118
      %s119 = sphi 0, %s116
      %s120 = sphi 0, %s119
      %s136 = sphi 0, %s120
      %s148 = sphi 0, %s150
      %s151 = sphi 0, %s148
      %s152 = sphi 0, %s151
      %s168 = sphi 0, %s152
      %s180 = sphi 0, %s182
      %s183 = sphi 0, %s180
      %s184 = sphi 0, %s183
      %s200 = sphi 0, %s184
      %s204 = sphi 0, %s204
      %s206 = sphi 0, %s204
      %s207 = sphi 0, %s206
      %s221 = sphi 0, %s207
      %s227 = sphi 0, %s229
      %s230 = sphi 0, %s227
      %s231 = sphi 0, %s230
      %s247 = sphi 0, %s231
    $region4: #{tpu_custom_call.1} parent=1 // loop_header_branch
      %27 = sbr.rel (%p25) target = $region8
    $region5: #{tpu_custom_call.1} parent=1 // loop_body
      %s29 = ssub.s32 %s24, 1
      %s30 = ssub.s32 %s24, 2
      %s37 = sadd.s32 1, %s32
      %p38 = scmp.ge.s32.totalorder %s37, 1
      %s39 = scalar_select %p38, 0, %s37
      %s40 = sadd.s32 1, %s31
      %s41 = scalar_select %p38, %s40, %s31
      %p42 = scmp.ge.s32.totalorder %s41, 2
      %s43 = scalar_select %p42, 0, %s41
      %s44 = sadd.s32 %s31, %s32
      %p45 = scmp.lt.s32.totalorder %s44, 0
      %s46 = scalar_select %p45, %s44, 0
      %s47 = sadd.s32 %s43, %s39
      %p48 = scmp.lt.s32.totalorder %s47, 0
      %s49 = scalar_select %p48, %s47, 0
      %s50 = ssub.s32 %s46, %s49
      %p51 = scmp.eq.s32.totalorder %s50, 0
      %s53 = sadd.s32 %s52, 1
      %s54 = scalar_select %p51, %s52, %s53
      %p57 = pneg %p51
      %p58 = scmp.eq.s32.totalorder %s24, 1
      %p59 = por %p57, %p58
      %p60 = scmp.ne.s32.totalorder %s52, %s55
      %p61 = scmp.eq.s32.totalorder %s24, 0
      %p62 = por %p60, %p61
      %p63 = scmp.ne.s32.totalorder %s52, %s55
      %p64 = scmp.eq.s32.totalorder %s29, 1
      %p65 = por %p63, %p64
      %p66 = scmp.ne.s32.totalorder %s55, %s56
      %p67 = scmp.eq.s32.totalorder %s29, 0
      %p68 = por %p66, %p67
      %p69 = scmp.ne.s32.totalorder %s55, %s56
      %p70 = scmp.eq.s32.totalorder %s30, 1
      %p71 = por %p69, %p70
      %p73 = scmp.ne.s32.totalorder %s56, %s72
      %p74 = scmp.eq.s32.totalorder %s30, 0
      %p75 = por %p73, %p74
      %s76 = sadd.s32 %s31, %s32
      %p77 = scmp.lt.s32.totalorder %s76, 0
      %s78 = scalar_select %p77, %s76, 0
      %s79 = sadd.s32 %s43, %s39
      %p80 = scmp.lt.s32.totalorder %s79, 0
      %s81 = scalar_select %p80, %s79, 0
      %s82 = ssub.s32 %s78, %s81
      %p83 = scmp.eq.s32.totalorder %s82, 0
      %s85 = sadd.s32 %s84, 1
      %s86 = scalar_select %p83, %s84, %s85
      %p89 = pneg %p83
      %p90 = scmp.eq.s32.totalorder %s24, 1
      %p91 = por %p89, %p90
      %p92 = scmp.ne.s32.totalorder %s84, %s87
      %p93 = scmp.eq.s32.totalorder %s24, 0
      %p94 = por %p92, %p93
      %p95 = scmp.ne.s32.totalorder %s84, %s87
      %p96 = scmp.eq.s32.totalorder %s29, 1
      %p97 = por %p95, %p96
      %p98 = scmp.ne.s32.totalorder %s87, %s88
      %p99 = scmp.eq.s32.totalorder %s29, 0
      %p100 = por %p98, %p99
      %p101 = scmp.ne.s32.totalorder %s87, %s88
      %p102 = scmp.eq.s32.totalorder %s30, 1
      %p103 = por %p101, %p102
      %p105 = scmp.ne.s32.totalorder %s88, %s104
      %p106 = scmp.eq.s32.totalorder %s30, 0
      %p107 = por %p105, %p106
      %s108 = sadd.s32 %s31, %s32
      %p109 = scmp.lt.s32.totalorder %s108, 0
      %s110 = scalar_select %p109, %s108, 0
      %s111 = sadd.s32 %s43, %s39
      %p112 = scmp.lt.s32.totalorder %s111, 0
      %s113 = scalar_select %p112, %s111, 0
      %s114 = ssub.s32 %s110, %s113
      %p115 = scmp.eq.s32.totalorder %s114, 0
      %s117 = sadd.s32 %s116, 1
      %s118 = scalar_select %p115, %s116, %s117
      %p121 = pneg %p115
      %p122 = scmp.eq.s32.totalorder %s24, 1
      %p123 = por %p121, %p122
      %p124 = scmp.ne.s32.totalorder %s116, %s119
      %p125 = scmp.eq.s32.totalorder %s24, 0
      %p126 = por %p124, %p125
      %p127 = scmp.ne.s32.totalorder %s116, %s119
      %p128 = scmp.eq.s32.totalorder %s29, 1
      %p129 = por %p127, %p128
      %p130 = scmp.ne.s32.totalorder %s119, %s120
      %p131 = scmp.eq.s32.totalorder %s29, 0
      %p132 = por %p130, %p131
      %p133 = scmp.ne.s32.totalorder %s119, %s120
      %p134 = scmp.eq.s32.totalorder %s30, 1
      %p135 = por %p133, %p134
      %p137 = scmp.ne.s32.totalorder %s120, %s136
      %p138 = scmp.eq.s32.totalorder %s30, 0
      %p139 = por %p137, %p138
      %s140 = sadd.s32 %s31, %s32
      %p141 = scmp.lt.s32.totalorder %s140, 0
      %s142 = scalar_select %p141, %s140, 0
      %s143 = sadd.s32 %s43, %s39
      %p144 = scmp.lt.s32.totalorder %s143, 0
      %s145 = scalar_select %p144, %s143, 0
      %s146 = ssub.s32 %s142, %s145
      %p147 = scmp.eq.s32.totalorder %s146, 0
      %s149 = sadd.s32 %s148, 1
      %s150 = scalar_select %p147, %s148, %s149
      %p153 = pneg %p147
      %p154 = scmp.eq.s32.totalorder %s24, 1
      %p155 = por %p153, %p154
      %p156 = scmp.ne.s32.totalorder %s148, %s151
      %p157 = scmp.eq.s32.totalorder %s24, 0
      %p158 = por %p156, %p157
      %p159 = scmp.ne.s32.totalorder %s148, %s151
      %p160 = scmp.eq.s32.totalorder %s29, 1
      %p161 = por %p159, %p160
      %p162 = scmp.ne.s32.totalorder %s151, %s152
      %p163 = scmp.eq.s32.totalorder %s29, 0
      %p164 = por %p162, %p163
      %p165 = scmp.ne.s32.totalorder %s151, %s152
      %p166 = scmp.eq.s32.totalorder %s30, 1
      %p167 = por %p165, %p166
      %p169 = scmp.ne.s32.totalorder %s152, %s168
      %p170 = scmp.eq.s32.totalorder %s30, 0
      %p171 = por %p169, %p170
      %s172 = sadd.s32 %s31, %s32
      %p173 = scmp.lt.s32.totalorder %s172, 0
      %s174 = scalar_select %p173, %s172, 0
      %s175 = sadd.s32 %s43, %s39
      %p176 = scmp.lt.s32.totalorder %s175, 0
      %s177 = scalar_select %p176, %s175, 0
      %s178 = ssub.s32 %s174, %s177
      %p179 = scmp.eq.s32.totalorder %s178, 0
      %s181 = sadd.s32 %s180, 1
      %s182 = scalar_select %p179, %s180, %s181
      %p185 = pneg %p179
      %p186 = scmp.eq.s32.totalorder %s24, 1
      %p187 = por %p185, %p186
      %p188 = scmp.ne.s32.totalorder %s180, %s183
      %p189 = scmp.eq.s32.totalorder %s24, 0
      %p190 = por %p188, %p189
      %p191 = scmp.ne.s32.totalorder %s180, %s183
      %p192 = scmp.eq.s32.totalorder %s29, 1
      %p193 = por %p191, %p192
      %p194 = scmp.ne.s32.totalorder %s183, %s184
      %p195 = scmp.eq.s32.totalorder %s29, 0
      %p196 = por %p194, %p195
      %p197 = scmp.ne.s32.totalorder %s183, %s184
      %p198 = scmp.eq.s32.totalorder %s30, 1
      %p199 = por %p197, %p198
      %p201 = scmp.ne.s32.totalorder %s184, %s200
      %p202 = scmp.eq.s32.totalorder %s30, 0
      %p203 = por %p201, %p202
      %s205 = sadd.s32 %s204, 1
      %p208 = scmp.eq.s32.totalorder %s24, 1
      %p209 = scmp.ne.s32.totalorder %s204, %s206
      %p210 = scmp.eq.s32.totalorder %s24, 0
      %p211 = por %p209, %p210
      %p212 = scmp.ne.s32.totalorder %s204, %s206
      %p213 = scmp.eq.s32.totalorder %s29, 1
      %p214 = por %p212, %p213
      %p215 = scmp.ne.s32.totalorder %s206, %s207
      %p216 = scmp.eq.s32.totalorder %s29, 0
      %p217 = por %p215, %p216
      %p218 = scmp.ne.s32.totalorder %s206, %s207
      %p219 = scmp.eq.s32.totalorder %s30, 1
      %p220 = por %p218, %p219
      %p222 = scmp.ne.s32.totalorder %s207, %s221
      %p223 = scmp.eq.s32.totalorder %s30, 0
      %p224 = por %p222, %p223
      %s225 = ssub.s32 %s31, %s43
      %p226 = scmp.eq.s32.totalorder %s225, 0
      %s228 = sadd.s32 %s227, 1
      %s229 = scalar_select %p226, %s227, %s228
      %p232 = pneg %p226
      %p233 = scmp.eq.s32.totalorder %s24, 1
      %p234 = por %p232, %p233
      %p235 = scmp.ne.s32.totalorder %s227, %s230
      %p236 = scmp.eq.s32.totalorder %s24, 0
      %p237 = por %p235, %p236
      %p238 = scmp.ne.s32.totalorder %s227, %s230
      %p239 = scmp.eq.s32.totalorder %s29, 1
      %p240 = por %p238, %p239
      %p241 = scmp.ne.s32.totalorder %s230, %s231
      %p242 = scmp.eq.s32.totalorder %s29, 0
      %p243 = por %p241, %p242
      %p244 = scmp.ne.s32.totalorder %s230, %s231
      %p245 = scmp.eq.s32.totalorder %s30, 1
      %p246 = por %p244, %p245
      %p248 = scmp.ne.s32.totalorder %s231, %s247
      %p249 = scmp.eq.s32.totalorder %s30, 0
      %p250 = por %p248, %p249
      %p251 = scmp.le.s32.totalorder 1, %s24
      %p252 = scmp.lt.s32.totalorder %s24, 3
      %p253 = pnand %p251, %p252
      %p254 = pneg %p253
      // Predicated region
      $region9: #{tpu_custom_call.1} parent=5 // pred_check
        _
      $region10: #{tpu_custom_call.1} parent=5 // pred_check_branch
        %256 = sbr.rel (%p253) target = $region12
      $region11: #{tpu_custom_call.1} parent=5 // pred_region
        %s257 = ssub.s32 %s24, 1
        // Predicated region
        $region13: #{tpu_custom_call.1} parent=11 // pred_check
          %p258 = pneg %p217
        $region14: #{tpu_custom_call.1} parent=11 // pred_check_branch
          %260 = sbr.rel (%p258) target = $region16
        $region15: #{tpu_custom_call.1} parent=11 // pred_region
          _
        $region16: #{tpu_custom_call.1} parent=11 // pred_fallthru
          _
      $region12: #{tpu_custom_call.1} parent=5 // pred_fallthru
        _
      %p261 = scmp.lt.s32.totalorder %s24, 2
      // Predicated region
      $region17: #{tpu_custom_call.1} parent=5 // pred_check
        %p262 = pneg %p261
      $region18: #{tpu_custom_call.1} parent=5 // pred_check_branch
        %264 = sbr.rel (%p262) target = $region20
      $region19: #{tpu_custom_call.1} parent=5 // pred_region
        // Predicated region
        $region21: #{tpu_custom_call.1} parent=19 // pred_check
          %p265 = pneg %p62
        $region22: #{tpu_custom_call.1} parent=19 // pred_check_branch
          %267 = sbr.rel (%p265) target = $region24
        $region23: #{tpu_custom_call.1} parent=19 // pred_region
          %s268 = sand.u32 %s52, 1
          %s269 = scalar_lea.sflag [#allocation6], %s268
          %s270 = sand.u32 %s52, 1
          %s271 = smul.addr %s270, 160
          %s272 = scalar_lea.vmem [#allocation5], %s271
          %s273 = sadd.s32 %s31, %s32
          %p274 = scmp.lt.s32.totalorder %s273, 0
          %s275 = scalar_select %p274, %s273, 0
          %s276 = smul.u32 20, %s275
          %s278 = ssub.s32 2560, 2560
          %279 = vsyncadd %s269, %s278
          %s280 = smul.addr %s276, 128
          %s281 = scalar_lea.hbm %s0, %s280
          %s282 = sshll.u32 %s272, 4
          %s283 = int_to_ptr.vmem [resolvable:$true] %s282
          %288 = dma.hbm_to_vmem [thread:$0]  %s281, 2560, %s283, %s269, 128, 128, 8
        $region24: #{tpu_custom_call.1} parent=19 // pred_fallthru
          _
        // Predicated region
        $region25: #{tpu_custom_call.1} parent=19 // pred_check
          %p289 = pneg %p94
        $region26: #{tpu_custom_call.1} parent=19 // pred_check_branch
          %291 = sbr.rel (%p289) target = $region28
        $region27: #{tpu_custom_call.1} parent=19 // pred_region
          %s292 = sand.u32 %s24, 1
          %s293 = scalar_lea.sflag [#allocation9], %s292
          %s294 = sand.u32 %s84, 1
          %s295 = smul.addr %s294, 160
          %s296 = scalar_lea.vmem [#allocation8], %s295
          %s297 = sadd.s32 %s31, %s32
          %p298 = scmp.lt.s32.totalorder %s297, 0
          %s299 = scalar_select %p298, %s297, 0
          %s300 = smul.u32 20, %s299
          %s302 = ssub.s32 2560, 2560
          %303 = vsyncadd %s293, %s302
          %s304 = smul.addr %s300, 128
          %s305 = scalar_lea.hbm %s1, %s304
          %s306 = sshll.u32 %s296, 4
          %s307 = int_to_ptr.vmem [resolvable:$true] %s306
          %312 = dma.hbm_to_vmem [thread:$0]  %s305, 2560, %s307, %s293, 128, 128, 8
        $region28: #{tpu_custom_call.1} parent=19 // pred_fallthru
          _
        // Predicated region
        $region29: #{tpu_custom_call.1} parent=19 // pred_check
          %p313 = pneg %p126
        $region30: #{tpu_custom_call.1} parent=19 // pred_check_branch
          %315 = sbr.rel (%p313) target = $region32
        $region31: #{tpu_custom_call.1} parent=19 // pred_region
          %s316 = sand.u32 %s24, 1
          %s317 = scalar_lea.sflag [#allocation9], %s316
          %s318 = sand.u32 %s116, 1
          %s319 = smul.addr %s318, 160
          %s320 = scalar_lea.vmem [#allocation10], %s319
          %s321 = sadd.s32 %s31, %s32
          %p322 = scmp.lt.s32.totalorder %s321, 0
          %s323 = scalar_select %p322, %s321, 0
          %s324 = smul.u32 20, %s323
          %s326 = ssub.s32 2560, 2560
          %327 = vsyncadd %s317, %s326
          %s328 = smul.addr %s324, 128
          %s329 = scalar_lea.hbm %s2, %s328
          %s330 = sshll.u32 %s320, 4
          %s331 = int_to_ptr.vmem [resolvable:$true] %s330
          %336 = dma.hbm_to_vmem [thread:$0]  %s329, 2560, %s331, %s317, 128, 128, 8
        $region32: #{tpu_custom_call.1} parent=19 // pred_fallthru
          _
        // Predicated region
        $region33: #{tpu_custom_call.1} parent=19 // pred_check
          %p337 = pneg %p158
        $region34: #{tpu_custom_call.1} parent=19 // pred_check_branch
          %339 = sbr.rel (%p337) target = $region36
        $region35: #{tpu_custom_call.1} parent=19 // pred_region
          %s340 = sand.u32 %s24, 1
          %s341 = scalar_lea.sflag [#allocation12], %s340
          %s342 = sand.u32 %s148, 1
          %s343 = smul.addr %s342, 160
          %s344 = scalar_lea.vmem [#allocation11], %s343
          %s345 = sadd.s32 %s31, %s32
          %p346 = scmp.lt.s32.totalorder %s345, 0
          %s347 = scalar_select %p346, %s345, 0
          %s348 = smul.u32 20, %s347
          %s350 = ssub.s32 2560, 2560
          %351 = vsyncadd %s341, %s350
          %s352 = smul.addr %s348, 128
          %s353 = scalar_lea.hbm %s3, %s352
          %s354 = sshll.u32 %s344, 4
          %s355 = int_to_ptr.vmem [resolvable:$true] %s354
          %360 = dma.hbm_to_vmem [thread:$0]  %s353, 2560, %s355, %s341, 128, 128, 8
        $region36: #{tpu_custom_call.1} parent=19 // pred_fallthru
          _
        // Predicated region
        $region37: #{tpu_custom_call.1} parent=19 // pred_check
          %p361 = pneg %p190
        $region38: #{tpu_custom_call.1} parent=19 // pred_check_branch
          %363 = sbr.rel (%p361) target = $region40
        $region39: #{tpu_custom_call.1} parent=19 // pred_region
          %s364 = sand.u32 %s24, 1
          %s365 = scalar_lea.sflag [#allocation12], %s364
          %s366 = sand.u32 %s180, 1
          %s367 = smul.addr %s366, 160
          %s368 = scalar_lea.vmem [#allocation13], %s367
          %s369 = sadd.s32 %s31, %s32
          %p370 = scmp.lt.s32.totalorder %s369, 0
          %s371 = scalar_select %p370, %s369, 0
          %s372 = smul.u32 20, %s371
          %s374 = ssub.s32 2560, 2560
          %375 = vsyncadd %s365, %s374
          %s376 = smul.addr %s372, 128
          %s377 = scalar_lea.hbm %s4, %s376
          %s378 = sshll.u32 %s368, 4
          %s379 = int_to_ptr.vmem [resolvable:$true] %s378
          %384 = dma.hbm_to_vmem [thread:$0]  %s377, 2560, %s379, %s365, 128, 128, 8
        $region40: #{tpu_custom_call.1} parent=19 // pred_fallthru
          _
      $region20: #{tpu_custom_call.1} parent=5 // pred_fallthru
        _
      %p385 = scmp.le.s32.totalorder 1, %s24
      %p386 = scmp.lt.s32.totalorder %s24, 3
      %p387 = pnand %p385, %p386
      %p388 = pneg %p387
      // Predicated region
      $region41: #{tpu_custom_call.1} parent=5 // pred_check
        _
      $region42: #{tpu_custom_call.1} parent=5 // pred_check_branch
        %390 = sbr.rel (%p387) target = $region44
      $region43: #{tpu_custom_call.1} parent=5 // pred_region
        %s391 = ssub.s32 %s24, 1
        %s392 = sand.u32 %s55, 1
        %s393 = scalar_lea.sflag [#allocation6], %s392
        %s394 = sand.u32 %s55, 1
        %s395 = smul.addr %s394, 160
        %s396 = scalar_lea.vmem [#allocation5], %s395
        // Predicated region
        $region45: #{tpu_custom_call.1} parent=43 // pred_check
          %p397 = pneg %p68
        $region46: #{tpu_custom_call.1} parent=43 // pred_check_branch
          %399 = sbr.rel (%p397) target = $region48
        $region47: #{tpu_custom_call.1} parent=43 // pred_region
          %400 = dma.done %s393, 2560
        $region48: #{tpu_custom_call.1} parent=43 // pred_fallthru
          _
        %s401 = sand.u32 %s29, 1
        %s402 = scalar_lea.sflag [#allocation9], %s401
        %s403 = sand.u32 %s87, 1
        %s404 = smul.addr %s403, 160
        %s405 = scalar_lea.vmem [#allocation8], %s404
        // Predicated region
        $region49: #{tpu_custom_call.1} parent=43 // pred_check
          %p406 = pneg %p100
        $region50: #{tpu_custom_call.1} parent=43 // pred_check_branch
          %408 = sbr.rel (%p406) target = $region52
        $region51: #{tpu_custom_call.1} parent=43 // pred_region
          %409 = dma.done %s402, 2560
        $region52: #{tpu_custom_call.1} parent=43 // pred_fallthru
          _
        %s410 = sand.u32 %s29, 1
        %s411 = scalar_lea.sflag [#allocation9], %s410
        %s412 = sand.u32 %s119, 1
        %s413 = smul.addr %s412, 160
        %s414 = scalar_lea.vmem [#allocation10], %s413
        // Predicated region
        $region53: #{tpu_custom_call.1} parent=43 // pred_check
          %p415 = pneg %p132
        $region54: #{tpu_custom_call.1} parent=43 // pred_check_branch
          %417 = sbr.rel (%p415) target = $region56
        $region55: #{tpu_custom_call.1} parent=43 // pred_region
          %418 = dma.done %s411, 2560
        $region56: #{tpu_custom_call.1} parent=43 // pred_fallthru
          _
        %s419 = sand.u32 %s29, 1
        %s420 = scalar_lea.sflag [#allocation12], %s419
        %s421 = sand.u32 %s151, 1
        %s422 = smul.addr %s421, 160
        %s423 = scalar_lea.vmem [#allocation11], %s422
        // Predicated region
        $region57: #{tpu_custom_call.1} parent=43 // pred_check
          %p424 = pneg %p164
        $region58: #{tpu_custom_call.1} parent=43 // pred_check_branch
          %426 = sbr.rel (%p424) target = $region60
        $region59: #{tpu_custom_call.1} parent=43 // pred_region
          %427 = dma.done %s420, 2560
        $region60: #{tpu_custom_call.1} parent=43 // pred_fallthru
          _
        %s428 = sand.u32 %s29, 1
        %s429 = scalar_lea.sflag [#allocation12], %s428
        %s430 = sand.u32 %s183, 1
        %s431 = smul.addr %s430, 160
        %s432 = scalar_lea.vmem [#allocation13], %s431
        // Predicated region
        $region61: #{tpu_custom_call.1} parent=43 // pred_check
          %p433 = pneg %p196
        $region62: #{tpu_custom_call.1} parent=43 // pred_check_branch
          %435 = sbr.rel (%p433) target = $region64
        $region63: #{tpu_custom_call.1} parent=43 // pred_region
          %436 = dma.done %s429, 2560
        $region64: #{tpu_custom_call.1} parent=43 // pred_fallthru
          _
        %s437 = sand.u32 %s55, 1
        %s438 = scalar_lea.sflag [#allocation6], %s437
        %s439 = sand.u32 %s55, 1
        %s440 = smul.addr %s439, 160
        %s441 = scalar_lea.vmem [#allocation5], %s440
        %p442 = pneg %p68
        %p443 = pneg %p65
        %s444 = sand.u32 %s29, 1
        %s445 = scalar_lea.sflag [#allocation9], %s444
        %s446 = sand.u32 %s87, 1
        %s447 = smul.addr %s446, 160
        %s448 = scalar_lea.vmem [#allocation8], %s447
        %p449 = pneg %p100
        %p450 = pneg %p97
        %s451 = sand.u32 %s29, 1
        %s452 = scalar_lea.sflag [#allocation9], %s451
        %s453 = sand.u32 %s119, 1
        %s454 = smul.addr %s453, 160
        %s455 = scalar_lea.vmem [#allocation10], %s454
        %p456 = pneg %p132
        %p457 = pneg %p129
        %s458 = sand.u32 %s29, 1
        %s459 = scalar_lea.sflag [#allocation12], %s458
        %s460 = sand.u32 %s151, 1
        %s461 = smul.addr %s460, 160
        %s462 = scalar_lea.vmem [#allocation11], %s461
        %p463 = pneg %p164
        %p464 = pneg %p161
        %s465 = sand.u32 %s29, 1
        %s466 = scalar_lea.sflag [#allocation12], %s465
        %s467 = sand.u32 %s183, 1
        %s468 = smul.addr %s467, 160
        %s469 = scalar_lea.vmem [#allocation13], %s468
        %p470 = pneg %p196
        %p471 = pneg %p193
        %p472 = pneg %p217
        %p473 = pneg %p214
        %p474 = pneg %p243
        %p475 = pneg %p240
        %s476 = sand.u32 %s230, 1
        %s477 = scalar_lea.sflag [#allocation7], %s476
        %s478 = sand.u32 %s230, 1
        %s479 = smul.addr %s478, 8
        %s480 = scalar_lea.vmem [#allocation14], %s479
        %s481 = sadd.s32 %s33, %s34
        %p482 = scmp.lt.s32.totalorder %s481, 0
        %s483 = scalar_select %p482, %s481, 0
        %s484 = smul.u32 20, %s483
        %s485 = sadd.s32 %s33, %s34
        %p486 = scmp.lt.s32.totalorder %s485, 0
        %s487 = scalar_select %p486, %s485, 0
        %s488 = smul.u32 20, %s487
        %s489 = sadd.s32 %s33, %s34
        %p490 = scmp.lt.s32.totalorder %s489, 0
        %s491 = scalar_select %p490, %s489, 0
        %s492 = smul.u32 20, %s491
        %s493 = sadd.s32 %s33, %s34
        %p494 = scmp.lt.s32.totalorder %s493, 0
        %s495 = scalar_select %p494, %s493, 0
        %s496 = smul.u32 20, %s495
        %s497 = sadd.s32 %s33, %s34
        %p498 = scmp.lt.s32.totalorder %s497, 0
        %s499 = scalar_select %p498, %s497, 0
        %s500 = smul.u32 20, %s499
        %p501 = scmp.eq.s32.totalorder %s34, 0
        // Predicated region
        $region65: #{tpu_custom_call.1} parent=43 // pred_check
          %p502 = pneg %p501
        $region66: #{tpu_custom_call.1} parent=43 // pred_check_branch
          %504 = sbr.rel (%p502) target = $region68
        $region67: #{tpu_custom_call.1} parent=43 // pred_region
          %505 = vst [vmem:[#allocation2] sm:$0xff] 0.0
          %506 = vst [vmem:[#allocation3] sm:$0xff] 0.0
          %507 = vst [vmem:[#allocation4] sm:$0xff] 0.0
        $region68: #{tpu_custom_call.1} parent=43 // pred_fallthru
          _
        %s508 = sadd.s32 %s33, %s34
        %s509 = smul.u32 %s508, 160
        %v510 = vlaneseq
        %v511 = vshrl.u32 %v510, 7
        %v512 = vadd.s32 %v511, 8
        %v513 = vadd.s32 %v511, 16
        %v514 = vadd.s32 %v511, 24
        %v515 = vadd.s32 %v511, 32
        %v516 = vadd.s32 %v511, 40
        %v517 = vadd.s32 %v511, 48
        %v518 = vadd.s32 %v511, 56
        %v519 = vadd.s32 %v511, 64
        %v520 = vadd.s32 %v511, 72
        %v521 = vadd.s32 %v511, 80
        %v522 = vadd.s32 %v511, 88
        %v523 = vadd.s32 %v511, 96
        %v524 = vadd.s32 %v511, 104
        %v525 = vadd.s32 %v511, 112
        %v526 = vadd.s32 %v511, 120
        %v527 = vadd.s32 %v511, 128
        %v528 = vadd.s32 %v511, 136
        %v529 = vadd.s32 %v511, 144
        %v530 = vadd.s32 %v511, 152
        %v531 = vstv %s509
        %v532 = vadd.s32 %v531, %v511
        %v533 = vadd.s32 %v531, %v512
        %v534 = vadd.s32 %v531, %v513
        %v535 = vadd.s32 %v531, %v514
        %v536 = vadd.s32 %v531, %v515
        %v537 = vadd.s32 %v531, %v516
        %v538 = vadd.s32 %v531, %v517
        %v539 = vadd.s32 %v531, %v518
        %v540 = vadd.s32 %v531, %v519
        %v541 = vadd.s32 %v531, %v520
        %v542 = vadd.s32 %v531, %v521
        %v543 = vadd.s32 %v531, %v522
        %v544 = vadd.s32 %v531, %v523
        %v545 = vadd.s32 %v531, %v524
        %v546 = vadd.s32 %v531, %v525
        %v547 = vadd.s32 %v531, %v526
        %v548 = vadd.s32 %v531, %v527
        %v549 = vadd.s32 %v531, %v528
        %v550 = vadd.s32 %v531, %v529
        %v551 = vadd.s32 %v531, %v530
        %vm552 = vcmp.lt.s32.totalorder %v532, 157
        %vm553 = vcmp.lt.s32.totalorder %v533, 157
        %vm554 = vcmp.lt.s32.totalorder %v534, 157
        %vm555 = vcmp.lt.s32.totalorder %v535, 157
        %vm556 = vcmp.lt.s32.totalorder %v536, 157
        %vm557 = vcmp.lt.s32.totalorder %v537, 157
        %vm558 = vcmp.lt.s32.totalorder %v538, 157
        %vm559 = vcmp.lt.s32.totalorder %v539, 157
        %vm560 = vcmp.lt.s32.totalorder %v540, 157
        %vm561 = vcmp.lt.s32.totalorder %v541, 157
        %vm562 = vcmp.lt.s32.totalorder %v542, 157
        %vm563 = vcmp.lt.s32.totalorder %v543, 157
        %vm564 = vcmp.lt.s32.totalorder %v544, 157
        %vm565 = vcmp.lt.s32.totalorder %v545, 157
        %vm566 = vcmp.lt.s32.totalorder %v546, 157
        %vm567 = vcmp.lt.s32.totalorder %v547, 157
        %vm568 = vcmp.lt.s32.totalorder %v548, 157
        %vm569 = vcmp.lt.s32.totalorder %v549, 157
        %vm570 = vcmp.lt.s32.totalorder %v550, 157
        %vm571 = vcmp.lt.s32.totalorder %v551, 157
        %v572 = vld [vmem:[%s396] sm:$0xff]
        %v573 = vld [vmem:[%s396 + $0x8] sm:$0xff]
        %v574 = vld [vmem:[%s396 + $0x10] sm:$0xff]
        %v575 = vld [vmem:[%s396 + $0x18] sm:$0xff]
        %v576 = vld [vmem:[%s396 + $0x20] sm:$0xff]
        %v577 = vld [vmem:[%s396 + $0x28] sm:$0xff]
        %v578 = vld [vmem:[%s396 + $0x30] sm:$0xff]
        %v579 = vld [vmem:[%s396 + $0x38] sm:$0xff]
        %v580 = vld [vmem:[%s396 + $0x40] sm:$0xff]
        %v581 = vld [vmem:[%s396 + $0x48] sm:$0xff]
        %v582 = vld [vmem:[%s396 + $0x50] sm:$0xff]
        %v583 = vld [vmem:[%s396 + $0x58] sm:$0xff]
        %v584 = vld [vmem:[%s396 + $0x60] sm:$0xff]
        %v585 = vld [vmem:[%s396 + $0x68] sm:$0xff]
        %v586 = vld [vmem:[%s396 + $0x70] sm:$0xff]
        %v587 = vld [vmem:[%s396 + $0x78] sm:$0xff]
        %v588 = vld [vmem:[%s396 + $0x80] sm:$0xff]
        %v589 = vld [vmem:[%s396 + $0x88] sm:$0xff]
        %v590 = vld [vmem:[%s396 + $0x90] sm:$0xff]
        %v591 = vld [vmem:[%s396 + $0x98] sm:$0xff]
        %v592 = vld [vmem:[%s405] sm:$0xff]
        %v593 = vld [vmem:[%s405 + $0x8] sm:$0xff]
        %v594 = vld [vmem:[%s405 + $0x10] sm:$0xff]
        %v595 = vld [vmem:[%s405 + $0x18] sm:$0xff]
        %v596 = vld [vmem:[%s405 + $0x20] sm:$0xff]
        %v597 = vld [vmem:[%s405 + $0x28] sm:$0xff]
        %v598 = vld [vmem:[%s405 + $0x30] sm:$0xff]
        %v599 = vld [vmem:[%s405 + $0x38] sm:$0xff]
        %v600 = vld [vmem:[%s405 + $0x40] sm:$0xff]
        %v601 = vld [vmem:[%s405 + $0x48] sm:$0xff]
        %v602 = vld [vmem:[%s405 + $0x50] sm:$0xff]
        %v603 = vld [vmem:[%s405 + $0x58] sm:$0xff]
        %v604 = vld [vmem:[%s405 + $0x60] sm:$0xff]
        %v605 = vld [vmem:[%s405 + $0x68] sm:$0xff]
        %v606 = vld [vmem:[%s405 + $0x70] sm:$0xff]
        %v607 = vld [vmem:[%s405 + $0x78] sm:$0xff]
        %v608 = vld [vmem:[%s405 + $0x80] sm:$0xff]
        %v609 = vld [vmem:[%s405 + $0x88] sm:$0xff]
        %v610 = vld [vmem:[%s405 + $0x90] sm:$0xff]
        %v611 = vld [vmem:[%s405 + $0x98] sm:$0xff]
        %v612 = vsub.f32 %v572, %v592
        %v613 = vsub.f32 %v573, %v593
        %v614 = vsub.f32 %v574, %v594
        %v615 = vsub.f32 %v575, %v595
        %v616 = vsub.f32 %v576, %v596
        %v617 = vsub.f32 %v577, %v597
        %v618 = vsub.f32 %v578, %v598
        %v619 = vsub.f32 %v579, %v599
        %v620 = vsub.f32 %v580, %v600
        %v621 = vsub.f32 %v581, %v601
        %v622 = vsub.f32 %v582, %v602
        %v623 = vsub.f32 %v583, %v603
        %v624 = vsub.f32 %v584, %v604
        %v625 = vsub.f32 %v585, %v605
        %v626 = vsub.f32 %v586, %v606
        %v627 = vsub.f32 %v587, %v607
        %v628 = vsub.f32 %v588, %v608
        %v629 = vsub.f32 %v589, %v609
        %v630 = vsub.f32 %v590, %v610
        %v631 = vsub.f32 %v591, %v611
        %v632 = vsel %vm552, %v612, 0.0
        %v633 = vsel %vm553, %v613, 0.0
        %v634 = vsel %vm554, %v614, 0.0
        %v635 = vsel %vm555, %v615, 0.0
        %v636 = vsel %vm556, %v616, 0.0
        %v637 = vsel %vm557, %v617, 0.0
        %v638 = vsel %vm558, %v618, 0.0
        %v639 = vsel %vm559, %v619, 0.0
        %v640 = vsel %vm560, %v620, 0.0
        %v641 = vsel %vm561, %v621, 0.0
        %v642 = vsel %vm562, %v622, 0.0
        %v643 = vsel %vm563, %v623, 0.0
        %v644 = vsel %vm564, %v624, 0.0
        %v645 = vsel %vm565, %v625, 0.0
        %v646 = vsel %vm566, %v626, 0.0
        %v647 = vsel %vm567, %v627, 0.0
        %v648 = vsel %vm568, %v628, 0.0
        %v649 = vsel %vm569, %v629, 0.0
        %v650 = vsel %vm570, %v630, 0.0
        %v651 = vsel %vm571, %v631, 0.0
        %v652 = vld [vmem:[#allocation2] sm:$0xff]
        %v653 = vmul.f32 %v632, %v632
        %v654 = vmul.f32 %v633, %v633
        %v655 = vmul.f32 %v634, %v634
        %v656 = vmul.f32 %v635, %v635
        %v657 = vmul.f32 %v636, %v636
        %v658 = vmul.f32 %v637, %v637
        %v659 = vmul.f32 %v638, %v638
        %v660 = vmul.f32 %v639, %v639
        %v661 = vmul.f32 %v640, %v640
        %v662 = vmul.f32 %v641, %v641
        %v663 = vmul.f32 %v642, %v642
        %v664 = vmul.f32 %v643, %v643
        %v665 = vmul.f32 %v644, %v644
        %v666 = vmul.f32 %v645, %v645
        %v667 = vmul.f32 %v646, %v646
        %v668 = vmul.f32 %v647, %v647
        %v669 = vmul.f32 %v648, %v648
        %v670 = vmul.f32 %v649, %v649
        %v671 = vmul.f32 %v650, %v650
        %v672 = vmul.f32 %v651, %v651
        %v673 = vadd.f32 %v653, %v654
        %v674 = vadd.f32 %v673, %v655
        %v675 = vadd.f32 %v674, %v656
        %v676 = vadd.f32 %v675, %v657
        %v677 = vadd.f32 %v676, %v658
        %v678 = vadd.f32 %v677, %v659
        %v679 = vadd.f32 %v678, %v660
        %v680 = vadd.f32 %v679, %v661
        %v681 = vadd.f32 %v680, %v662
        %v682 = vadd.f32 %v681, %v663
        %v683 = vadd.f32 %v682, %v664
        %v684 = vadd.f32 %v683, %v665
        %v685 = vadd.f32 %v684, %v666
        %v686 = vadd.f32 %v685, %v667
        %v687 = vadd.f32 %v686, %v668
        %v688 = vadd.f32 %v687, %v669
        %v689 = vadd.f32 %v688, %v670
        %v690 = vadd.f32 %v689, %v671
        %v691 = vadd.f32 %v690, %v672
        %v692 = vadd.f32 %v652, %v691
        %693 = vst [vmem:[#allocation2] sm:$0xff] %v692
        %v694 = vld [vmem:[%s423] sm:$0xff]
        %v695 = vld [vmem:[%s423 + $0x8] sm:$0xff]
        %v696 = vld [vmem:[%s423 + $0x10] sm:$0xff]
        %v697 = vld [vmem:[%s423 + $0x18] sm:$0xff]
        %v698 = vld [vmem:[%s423 + $0x20] sm:$0xff]
        %v699 = vld [vmem:[%s423 + $0x28] sm:$0xff]
        %v700 = vld [vmem:[%s423 + $0x30] sm:$0xff]
        %v701 = vld [vmem:[%s423 + $0x38] sm:$0xff]
        %v702 = vld [vmem:[%s423 + $0x40] sm:$0xff]
        %v703 = vld [vmem:[%s423 + $0x48] sm:$0xff]
        %v704 = vld [vmem:[%s423 + $0x50] sm:$0xff]
        %v705 = vld [vmem:[%s423 + $0x58] sm:$0xff]
        %v706 = vld [vmem:[%s423 + $0x60] sm:$0xff]
        %v707 = vld [vmem:[%s423 + $0x68] sm:$0xff]
        %v708 = vld [vmem:[%s423 + $0x70] sm:$0xff]
        %v709 = vld [vmem:[%s423 + $0x78] sm:$0xff]
        %v710 = vld [vmem:[%s423 + $0x80] sm:$0xff]
        %v711 = vld [vmem:[%s423 + $0x88] sm:$0xff]
        %v712 = vld [vmem:[%s423 + $0x90] sm:$0xff]
        %v713 = vld [vmem:[%s423 + $0x98] sm:$0xff]
        %v714 = vmax.f32 %v694, 0.0
        %v715 = vmax.f32 %v695, 0.0
        %v716 = vmax.f32 %v696, 0.0
        %v717 = vmax.f32 %v697, 0.0
        %v718 = vmax.f32 %v698, 0.0
        %v719 = vmax.f32 %v699, 0.0
        %v720 = vmax.f32 %v700, 0.0
        %v721 = vmax.f32 %v701, 0.0
        %v722 = vmax.f32 %v702, 0.0
        %v723 = vmax.f32 %v703, 0.0
        %v724 = vmax.f32 %v704, 0.0
        %v725 = vmax.f32 %v705, 0.0
        %v726 = vmax.f32 %v706, 0.0
        %v727 = vmax.f32 %v707, 0.0
        %v728 = vmax.f32 %v708, 0.0
        %v729 = vmax.f32 %v709, 0.0
        %v730 = vmax.f32 %v710, 0.0
        %v731 = vmax.f32 %v711, 0.0
        %v732 = vmax.f32 %v712, 0.0
        %v733 = vmax.f32 %v713, 0.0
        %v734 = vld [vmem:[%s432] sm:$0xff]
        %v735 = vld [vmem:[%s432 + $0x8] sm:$0xff]
        %v736 = vld [vmem:[%s432 + $0x10] sm:$0xff]
        %v737 = vld [vmem:[%s432 + $0x18] sm:$0xff]
        %v738 = vld [vmem:[%s432 + $0x20] sm:$0xff]
        %v739 = vld [vmem:[%s432 + $0x28] sm:$0xff]
        %v740 = vld [vmem:[%s432 + $0x30] sm:$0xff]
        %v741 = vld [vmem:[%s432 + $0x38] sm:$0xff]
        %v742 = vld [vmem:[%s432 + $0x40] sm:$0xff]
        %v743 = vld [vmem:[%s432 + $0x48] sm:$0xff]
        %v744 = vld [vmem:[%s432 + $0x50] sm:$0xff]
        %v745 = vld [vmem:[%s432 + $0x58] sm:$0xff]
        %v746 = vld [vmem:[%s432 + $0x60] sm:$0xff]
        %v747 = vld [vmem:[%s432 + $0x68] sm:$0xff]
        %v748 = vld [vmem:[%s432 + $0x70] sm:$0xff]
        %v749 = vld [vmem:[%s432 + $0x78] sm:$0xff]
        %v750 = vld [vmem:[%s432 + $0x80] sm:$0xff]
        %v751 = vld [vmem:[%s432 + $0x88] sm:$0xff]
        %v752 = vld [vmem:[%s432 + $0x90] sm:$0xff]
        %v753 = vld [vmem:[%s432 + $0x98] sm:$0xff]
        %v754 = vmax.f32 %v734, 0.0
        %v755 = vmax.f32 %v735, 0.0
        %v756 = vmax.f32 %v736, 0.0
        %v757 = vmax.f32 %v737, 0.0
        %v758 = vmax.f32 %v738, 0.0
        %v759 = vmax.f32 %v739, 0.0
        %v760 = vmax.f32 %v740, 0.0
        %v761 = vmax.f32 %v741, 0.0
        %v762 = vmax.f32 %v742, 0.0
        %v763 = vmax.f32 %v743, 0.0
        %v764 = vmax.f32 %v744, 0.0
        %v765 = vmax.f32 %v745, 0.0
        %v766 = vmax.f32 %v746, 0.0
        %v767 = vmax.f32 %v747, 0.0
        %v768 = vmax.f32 %v748, 0.0
        %v769 = vmax.f32 %v749, 0.0
        %v770 = vmax.f32 %v750, 0.0
        %v771 = vmax.f32 %v751, 0.0
        %v772 = vmax.f32 %v752, 0.0
        %v773 = vmax.f32 %v753, 0.0
        %v774 = vadd.f32 %v714, %v754
        %v775 = vadd.f32 %v715, %v755
        %v776 = vadd.f32 %v716, %v756
        %v777 = vadd.f32 %v717, %v757
        %v778 = vadd.f32 %v718, %v758
        %v779 = vadd.f32 %v719, %v759
        %v780 = vadd.f32 %v720, %v760
        %v781 = vadd.f32 %v721, %v761
        %v782 = vadd.f32 %v722, %v762
        %v783 = vadd.f32 %v723, %v763
        %v784 = vadd.f32 %v724, %v764
        %v785 = vadd.f32 %v725, %v765
        %v786 = vadd.f32 %v726, %v766
        %v787 = vadd.f32 %v727, %v767
        %v788 = vadd.f32 %v728, %v768
        %v789 = vadd.f32 %v729, %v769
        %v790 = vadd.f32 %v730, %v770
        %v791 = vadd.f32 %v731, %v771
        %v792 = vadd.f32 %v732, %v772
        %v793 = vadd.f32 %v733, %v773
        %v794 = vld [vmem:[#allocation3] sm:$0xff]
        %v795 = vsel %vm552, %v774, 0.0
        %v796 = vsel %vm553, %v775, 0.0
        %v797 = vsel %vm554, %v776, 0.0
        %v798 = vsel %vm555, %v777, 0.0
        %v799 = vsel %vm556, %v778, 0.0
        %v800 = vsel %vm557, %v779, 0.0
        %v801 = vsel %vm558, %v780, 0.0
        %v802 = vsel %vm559, %v781, 0.0
        %v803 = vsel %vm560, %v782, 0.0
        %v804 = vsel %vm561, %v783, 0.0
        %v805 = vsel %vm562, %v784, 0.0
        %v806 = vsel %vm563, %v785, 0.0
        %v807 = vsel %vm564, %v786, 0.0
        %v808 = vsel %vm565, %v787, 0.0
        %v809 = vsel %vm566, %v788, 0.0
        %v810 = vsel %vm567, %v789, 0.0
        %v811 = vsel %vm568, %v790, 0.0
        %v812 = vsel %vm569, %v791, 0.0
        %v813 = vsel %vm570, %v792, 0.0
        %v814 = vsel %vm571, %v793, 0.0
        %v815 = vadd.f32 %v795, %v796
        %v816 = vadd.f32 %v815, %v797
        %v817 = vadd.f32 %v816, %v798
        %v818 = vadd.f32 %v817, %v799
        %v819 = vadd.f32 %v818, %v800
        %v820 = vadd.f32 %v819, %v801
        %v821 = vadd.f32 %v820, %v802
        %v822 = vadd.f32 %v821, %v803
        %v823 = vadd.f32 %v822, %v804
        %v824 = vadd.f32 %v823, %v805
        %v825 = vadd.f32 %v824, %v806
        %v826 = vadd.f32 %v825, %v807
        %v827 = vadd.f32 %v826, %v808
        %v828 = vadd.f32 %v827, %v809
        %v829 = vadd.f32 %v828, %v810
        %v830 = vadd.f32 %v829, %v811
        %v831 = vadd.f32 %v830, %v812
        %v832 = vadd.f32 %v831, %v813
        %v833 = vadd.f32 %v832, %v814
        %v834 = vadd.f32 %v794, %v833
        %835 = vst [vmem:[#allocation3] sm:$0xff] %v834
        %v836 = vld [vmem:[#allocation4] sm:$0xff]
        %v837 = vld [vmem:[%s414] sm:$0xff]
        %v838 = vld [vmem:[%s414 + $0x8] sm:$0xff]
        %v839 = vld [vmem:[%s414 + $0x10] sm:$0xff]
        %v840 = vld [vmem:[%s414 + $0x18] sm:$0xff]
        %v841 = vld [vmem:[%s414 + $0x20] sm:$0xff]
        %v842 = vld [vmem:[%s414 + $0x28] sm:$0xff]
        %v843 = vld [vmem:[%s414 + $0x30] sm:$0xff]
        %v844 = vld [vmem:[%s414 + $0x38] sm:$0xff]
        %v845 = vld [vmem:[%s414 + $0x40] sm:$0xff]
        %v846 = vld [vmem:[%s414 + $0x48] sm:$0xff]
        %v847 = vld [vmem:[%s414 + $0x50] sm:$0xff]
        %v848 = vld [vmem:[%s414 + $0x58] sm:$0xff]
        %v849 = vld [vmem:[%s414 + $0x60] sm:$0xff]
        %v850 = vld [vmem:[%s414 + $0x68] sm:$0xff]
        %v851 = vld [vmem:[%s414 + $0x70] sm:$0xff]
        %v852 = vld [vmem:[%s414 + $0x78] sm:$0xff]
        %v853 = vld [vmem:[%s414 + $0x80] sm:$0xff]
        %v854 = vld [vmem:[%s414 + $0x88] sm:$0xff]
        %v855 = vld [vmem:[%s414 + $0x90] sm:$0xff]
        %v856 = vld [vmem:[%s414 + $0x98] sm:$0xff]
        %v857 = vmin.f32 %v837, 0.0
        %v858 = vmin.f32 %v838, 0.0
        %v859 = vmin.f32 %v839, 0.0
        %v860 = vmin.f32 %v840, 0.0
        %v861 = vmin.f32 %v841, 0.0
        %v862 = vmin.f32 %v842, 0.0
        %v863 = vmin.f32 %v843, 0.0
        %v864 = vmin.f32 %v844, 0.0
        %v865 = vmin.f32 %v845, 0.0
        %v866 = vmin.f32 %v846, 0.0
        %v867 = vmin.f32 %v847, 0.0
        %v868 = vmin.f32 %v848, 0.0
        %v869 = vmin.f32 %v849, 0.0
        %v870 = vmin.f32 %v850, 0.0
        %v871 = vmin.f32 %v851, 0.0
        %v872 = vmin.f32 %v852, 0.0
        %v873 = vmin.f32 %v853, 0.0
        %v874 = vmin.f32 %v854, 0.0
        %v875 = vmin.f32 %v855, 0.0
        %v876 = vmin.f32 %v856, 0.0
        %v877 = vsel %vm552, %v857, 0.0
        %v878 = vsel %vm553, %v858, 0.0
        %v879 = vsel %vm554, %v859, 0.0
        %v880 = vsel %vm555, %v860, 0.0
        %v881 = vsel %vm556, %v861, 0.0
        %v882 = vsel %vm557, %v862, 0.0
        %v883 = vsel %vm558, %v863, 0.0
        %v884 = vsel %vm559, %v864, 0.0
        %v885 = vsel %vm560, %v865, 0.0
        %v886 = vsel %vm561, %v866, 0.0
        %v887 = vsel %vm562, %v867, 0.0
        %v888 = vsel %vm563, %v868, 0.0
        %v889 = vsel %vm564, %v869, 0.0
        %v890 = vsel %vm565, %v870, 0.0
        %v891 = vsel %vm566, %v871, 0.0
        %v892 = vsel %vm567, %v872, 0.0
        %v893 = vsel %vm568, %v873, 0.0
        %v894 = vsel %vm569, %v874, 0.0
        %v895 = vsel %vm570, %v875, 0.0
        %v896 = vsel %vm571, %v876, 0.0
        %v897 = vadd.f32 %v877, %v878
        %v898 = vadd.f32 %v897, %v879
        %v899 = vadd.f32 %v898, %v880
        %v900 = vadd.f32 %v899, %v881
        %v901 = vadd.f32 %v900, %v882
        %v902 = vadd.f32 %v901, %v883
        %v903 = vadd.f32 %v902, %v884
        %v904 = vadd.f32 %v903, %v885
        %v905 = vadd.f32 %v904, %v886
        %v906 = vadd.f32 %v905, %v887
        %v907 = vadd.f32 %v906, %v888
        %v908 = vadd.f32 %v907, %v889
        %v909 = vadd.f32 %v908, %v890
        %v910 = vadd.f32 %v909, %v891
        %v911 = vadd.f32 %v910, %v892
        %v912 = vadd.f32 %v911, %v893
        %v913 = vadd.f32 %v912, %v894
        %v914 = vadd.f32 %v913, %v895
        %v915 = vadd.f32 %v914, %v896
        %v916 = vadd.f32 %v836, %v915
        %917 = vst [vmem:[#allocation4] sm:$0xff] %v916
        // Predicated region
        $region69: #{tpu_custom_call.1} parent=43 // pred_check
          %p918 = pneg %p501
        $region70: #{tpu_custom_call.1} parent=43 // pred_check_branch
          %920 = sbr.rel (%p918) target = $region72
        $region71: #{tpu_custom_call.1} parent=43 // pred_region
          %v921 = vld [vmem:[#allocation2] sm:$0xff]
          %922 = vadd.xlane.f32.xlu0 %v921
          %v923 = vpop.xlane.xlu0 %922
          %v924 = vrot.slane %v923, 4
          %v925 = vadd.f32 %v923, %v924
          %v926 = vrot.slane %v925, 2
          %v927 = vadd.f32 %v925, %v926
          %v928 = vrot.slane %v927, 1
          %v929 = vadd.f32 %v927, %v928
          %s930 = vtos %v929
          %s931 = smul.f32 %s930, 0.0005
          %p932 = scmp.eq.s32.totalorder %s33, 0
          %v933 = vld [vmem:[%s5] sm:$0xff]
          %v934 = vmin.f32 %v933, 0.0
          %935 = vadd.xlane.f32.xlu0 %v934
          %v936 = vpop.xlane.xlu0 %935
          %v937 = vrot.slane %v936, 4
          %v938 = vadd.f32 %v936, %v937
          %v939 = vrot.slane %v938, 2
          %v940 = vadd.f32 %v938, %v939
          %v941 = vrot.slane %v940, 1
          %v942 = vadd.f32 %v940, %v941
          %s943 = vtos %v942
          %s944 = ssub.f32 0.0, %s943
          %s945 = scalar_select %p932, %s944, 0.0
          %s946 = sadd.f32 %s931, %s945
          %v947 = vld [vmem:[#allocation3] sm:$0xff]
          %948 = vadd.xlane.f32.xlu0 %v947
          %v949 = vpop.xlane.xlu0 %948
          %v950 = vrot.slane %v949, 4
          %v951 = vadd.f32 %v949, %v950
          %v952 = vrot.slane %v951, 2
          %v953 = vadd.f32 %v951, %v952
          %v954 = vrot.slane %v953, 1
          %v955 = vadd.f32 %v953, %v954
          %s956 = vtos %v955
          %v957 = vld [vmem:[#allocation4] sm:$0xff]
          %958 = vadd.xlane.f32.xlu0 %v957
          %v959 = vpop.xlane.xlu0 %958
          %v960 = vrot.slane %v959, 4
          %v961 = vadd.f32 %v959, %v960
          %v962 = vrot.slane %v961, 2
          %v963 = vadd.f32 %v961, %v962
          %v964 = vrot.slane %v963, 1
          %v965 = vadd.f32 %v963, %v964
          %s966 = vtos %v965
          %s967 = ssub.f32 %s956, %s966
          %s968 = sadd.f32 %s946, %s967
          %v969 = vstv %s968
          %970 = vst [vmem:[%s480] sm:$0xff] %v969
        $region72: #{tpu_custom_call.1} parent=43 // pred_fallthru
          _
        %s971 = sand.u32 %s230, 1
        %s972 = scalar_lea.sflag [#allocation7], %s971
        %s973 = sand.u32 %s230, 1
        %s974 = smul.addr %s973, 8
        %s975 = scalar_lea.vmem [#allocation14], %s974
        // Predicated region
        $region73: #{tpu_custom_call.1} parent=43 // pred_check
          %p976 = pneg %p240
        $region74: #{tpu_custom_call.1} parent=43 // pred_check_branch
          %978 = sbr.rel (%p976) target = $region76
        $region75: #{tpu_custom_call.1} parent=43 // pred_region
          %s980 = ssub.s32 128, 128
          %981 = vsyncadd %s972, %s980
          %s982 = smul.addr %s33, 128
          %s983 = scalar_lea.hbm %s6, %s982
          %s985 = sshll.u32 %s975, 4
          %s986 = int_to_ptr.vmem [resolvable:$true] %s985
          %988 = dma.vmem_to_hbm [thread:$0]  %s986, 128, %s983, %s972
        $region76: #{tpu_custom_call.1} parent=43 // pred_fallthru
          _
      $region44: #{tpu_custom_call.1} parent=5 // pred_fallthru
        _
      %p989 = scmp.le.s32.totalorder 2, %s24
      // Predicated region
      $region77: #{tpu_custom_call.1} parent=5 // pred_check
        %p990 = pneg %p989
      $region78: #{tpu_custom_call.1} parent=5 // pred_check_branch
        %992 = sbr.rel (%p990) target = $region80
      $region79: #{tpu_custom_call.1} parent=5 // pred_region
        %s993 = ssub.s32 %s24, 2
        // Predicated region
        $region81: #{tpu_custom_call.1} parent=79 // pred_check
          %p994 = pneg %p246
        $region82: #{tpu_custom_call.1} parent=79 // pred_check_branch
          %996 = sbr.rel (%p994) target = $region84
        $region83: #{tpu_custom_call.1} parent=79 // pred_region
          %s997 = sand.u32 %s231, 1
          %s998 = scalar_lea.sflag [#allocation7], %s997
          %s999 = sand.u32 %s231, 1
          %s1000 = smul.addr %s999, 8
          %s1001 = scalar_lea.vmem [#allocation14], %s1000
          %1002 = dma.done %s998, 128
        $region84: #{tpu_custom_call.1} parent=79 // pred_fallthru
          _
      $region80: #{tpu_custom_call.1} parent=5 // pred_fallthru
        _
    $region6: #{tpu_custom_call.1} parent=1 // loop_footer
      %s28 = sadd.s32 1, %s24
    $region7: #{tpu_custom_call.1} parent=1 // loop_footer_branch
      %23 = sbr.rel target = $region3
    $region8: #{tpu_custom_call.1} parent=1 // loop_exit
      _
    %1003 = vsyncpa [#allocation6], 1
    %s1004 = scalar_lea.sflag [#allocation6], 1
    %1005 = vsyncpa %s1004, 1
    %1006 = vsyncpa [#allocation9], 1
    %s1007 = scalar_lea.sflag [#allocation9], 1
    %1008 = vsyncpa %s1007, 1
    %1009 = vsyncpa [#allocation12], 1
    %s1010 = scalar_lea.sflag [#allocation12], 1
    %1011 = vsyncpa %s1010, 1
    %1012 = vsyncpa [#allocation7], 1
    %s1013 = scalar_lea.sflag [#allocation7], 1
    %1014 = vsyncpa %s1013, 1

</llo_original>
